<compile_context>
chip_gen: v7x
topology: tpu7x:2x2x1
jax: 0.10.0
libtpu: 0.0.40
codegen_flags: <defaults>
</compile_context>

<pallas_src>
import functools

import jax
import jax.numpy as jnp
from jax.experimental import pallas as pl
from jax.experimental.pallas import tpu as pltpu

_LANE = 128
_ALIGN = 8 * _LANE          # 1024: tiles are multiples of this -> dense (8,128) blocks


def mlp_kernel(params_ref, x_ref, o_ref):
    # params (SMEM, f32[9]): [a1_00, a1_01, a1_10, a1_11, c1_0, c1_1, a2_0, a2_1, c2]
    # (pre-folded sigmoid-as-tanh constants, see wrapper).
    x0 = x_ref[0]                     # (tile//128, 128)  dense, batch on lanes
    x1 = x_ref[1]

    # Layer 1: t_j = tanh(0.5*(w1_j . x + b1_j))   -> sigmoid via EUP tanh
    t0 = jnp.tanh(params_ref[0] * x0 + params_ref[1] * x1 + params_ref[4])
    t1 = jnp.tanh(params_ref[2] * x0 + params_ref[3] * x1 + params_ref[5])

    # Layer 2 with the 0.5*(t+1) fold absorbed into a2/c2:
    y = 0.5 * jnp.tanh(params_ref[6] * t0 + params_ref[7] * t1 + params_ref[8]) + 0.5
    o_ref[...] = y.astype(o_ref.dtype)   # (tile//128, 128): lane-dense unmasked store


@functools.partial(jax.jit, static_argnames=("tile_cap",))
def question4_forward(x, w1, b1, w2, b2, *, tile_cap=512 * 1024):
    """x: (B, 2) f32.  w1: (2, 2), b1: (2,), w2: (1, 2), b2: (1,) (torch.nn.Linear
    convention).  Returns (B, 1) f32 == Sigmoid(Linear(Sigmoid(Linear(x))))."""
    x = jnp.asarray(x, jnp.float32)
    B, in_dim = x.shape

    # ---- tile selection -----------------------------------------------------
    # Batch rounded up to a multiple of 1024 so every block is (8k, 128)-dense.
    b_lane = -(-B // _ALIGN) * _ALIGN
    # Cap per-tile VMEM (~24 B/elem double-buffered => 12 MB at 512K), keep >=2
    # tiles when possible so the "parallel" grid can shard across v7x's 2 TCs,
    # and size the tile as ceil(b_lane/n_tiles) so padding waste stays < n*1024.
    n_tiles = max(-(-b_lane // tile_cap), 2 if b_lane >= 2 * _ALIGN else 1)
    tile = -(-(b_lane // _ALIGN) // n_tiles) * _ALIGN
    b_pad = n_tiles * tile
    rows = tile // _LANE                      # sublane extent of each block

    # ---- input layout: feature-major, lane-dense ----------------------------
    # pad + transpose + reshape fuse into one XLA copy producing (2, b_pad/128, 128).
    # TODO(synk): accept a feature-major (2, B) input upstream to avoid this extra
    # HBM round-trip entirely once the kernel is HBM-bound.
    x_pad = jnp.pad(x, ((0, b_pad - B), (0, 0)))
    x_t = x_pad.T.reshape(in_dim, b_pad // _LANE, _LANE)

    # ---- fold sigmoid(=0.5*tanh(0.5 z)+0.5) constants into the 9 params ------
    w1 = jnp.asarray(w1, jnp.float32).reshape(2, 2)
    b1 = jnp.asarray(b1, jnp.float32).reshape(2)
    w2 = jnp.asarray(w2, jnp.float32).reshape(2)
    b2 = jnp.asarray(b2, jnp.float32).reshape(1)
    a1 = (0.5 * w1).reshape(-1)               # layer-1 tanh args
    c1 = 0.5 * b1
    a2 = 0.25 * w2                            # layer-2 tanh args (h = 0.5*(t+1) folded)
    c2 = (0.5 * b2 + 0.25 * jnp.sum(w2)).reshape(1)
    params = jnp.concatenate([a1, c1, a2, c2])            # f32[9] -> SMEM

    out = pl.pallas_call(
        mlp_kernel,
        out_shape=jax.ShapeDtypeStruct((b_pad // _LANE, _LANE), jnp.float32),
        grid=(n_tiles,),
        in_specs=[
            pl.BlockSpec(memory_space=pltpu.MemorySpace.SMEM),       # 9 params
            pl.BlockSpec((in_dim, rows, _LANE), lambda i: (0, i, 0)),  # x slab
        ],
        out_specs=pl.BlockSpec((rows, _LANE), lambda i: (i, 0)),
        compiler_params=pltpu.CompilerParams(
            dimension_semantics=("parallel",),
            vmem_limit_bytes=32 << 20,        # headroom for 512K-element tiles
        ),
    )(params, x_t)

    return out.reshape(-1)[:B].reshape(B, 1)  # back to (B, 1) batch-major


if __name__ == "__main__":
    # Deterministic parameters exactly as in the PyTorch module's __init__.
    w1 = jnp.array([[0.1, 0.3], [0.2, 0.4]], dtype=jnp.float32)   # Linear(2,2).weight
    b1 = jnp.array([0.5, 0.6], dtype=jnp.float32)                 # Linear(2,2).bias
    w2 = jnp.array([[0.7, 0.8]], dtype=jnp.float32)               # Linear(2,1).weight
    b2 = jnp.array([0.9], dtype=jnp.float32)                      # Linear(2,1).bias

    def ref(xx):
        h = jax.nn.sigmoid(xx @ w1.T + b1)
        return jax.nn.sigmoid(h @ w2.T + b2)

    # Small deterministic batch; row 0 is the module's example input [[0.3, 0.7]].
    key = jax.random.PRNGKey(0)
    x = jax.random.uniform(key, (256, 2), dtype=jnp.float32)
    x = x.at[0].set(jnp.array([0.3, 0.7], dtype=jnp.float32))

    out = jax.block_until_ready(question4_forward(x, w1, b1, w2, b2))
    assert out.shape == (256, 1), out.shape
    assert jnp.allclose(out, ref(x), atol=1e-5, rtol=1e-5), (out[:4], ref(x)[:4])

    # The module's exact (1, 2) example through the same kernel path.
    out1 = jax.block_until_ready(question4_forward(x[:1], w1, b1, w2, b2))
    assert out1.shape == (1, 1)
    assert jnp.allclose(out1, ref(x[:1]), atol=1e-5, rtol=1e-5), (out1, ref(x[:1]))

    # A batch that exercises the multi-tile (n_tiles >= 2) + padding path.
    x3 = jax.random.uniform(jax.random.PRNGKey(1), (3000, 2), dtype=jnp.float32)
    out3 = jax.block_until_ready(question4_forward(x3, w1, b1, w2, b2))
    assert out3.shape == (3000, 1)
    assert jnp.allclose(out3, ref(x3), atol=1e-5, rtol=1e-5)

    print("KERNEL_OK")
</pallas_src>

<mosaic_0001>
module attributes {stable_mosaic.version = 11 : i64} {
  func.func @mlp_kernel(%arg0: i32, %arg1: memref<9xf32, #tpu.memory_space<smem>>, %arg2: memref<2x8x128xf32, #tpu.memory_space<vmem>>, %arg3: memref<8x128xf32, #tpu.memory_space<vmem>>) attributes {dimension_semantics = [#tpu.dimension_semantics<parallel>], iteration_bounds = array<i64: 1>, scalar_prefetch = 0 : i64, scratch_operands = 0 : i64, tpu.core_type = #tpu.core_type<tc>, window_params = [{transform_indices = @transform_0, window_bounds = array<i64: 9>}, {transform_indices = @transform_1, window_bounds = array<i64: 2, 8, 128>}, {transform_indices = @transform_2, window_bounds = array<i64: 8, 128>}]} {
    %c0 = arith.constant 0 : index
    %c0_0 = arith.constant 0 : index
    %c0_1 = arith.constant 0 : index
    %0 = vector.load %arg2[%c0, %c0_0, %c0_1] : memref<2x8x128xf32, #tpu.memory_space<vmem>>, vector<1x8x128xf32>
    %1 = vector.shape_cast %0 : vector<1x8x128xf32> to vector<8x128xf32>
    %c1 = arith.constant 1 : index
    %c0_2 = arith.constant 0 : index
    %c0_3 = arith.constant 0 : index
    %2 = vector.load %arg2[%c1, %c0_2, %c0_3] : memref<2x8x128xf32, #tpu.memory_space<vmem>>, vector<1x8x128xf32>
    %3 = vector.shape_cast %2 : vector<1x8x128xf32> to vector<8x128xf32>
    %c0_4 = arith.constant 0 : index
    %4 = memref.load %arg1[%c0_4] : memref<9xf32, #tpu.memory_space<smem>>
    %5 = vector.broadcast %4 : f32 to vector<8x128xf32>
    %6 = arith.mulf %5, %1 : vector<8x128xf32>
    %c1_5 = arith.constant 1 : index
    %7 = memref.load %arg1[%c1_5] : memref<9xf32, #tpu.memory_space<smem>>
    %8 = vector.broadcast %7 : f32 to vector<8x128xf32>
    %9 = arith.mulf %8, %3 : vector<8x128xf32>
    %10 = arith.addf %6, %9 : vector<8x128xf32>
    %c4 = arith.constant 4 : index
    %11 = memref.load %arg1[%c4] : memref<9xf32, #tpu.memory_space<smem>>
    %12 = vector.broadcast %11 : f32 to vector<8x128xf32>
    %13 = arith.addf %10, %12 : vector<8x128xf32>
    %14 = math.tanh %13 : vector<8x128xf32>
    %c2 = arith.constant 2 : index
    %15 = memref.load %arg1[%c2] : memref<9xf32, #tpu.memory_space<smem>>
    %16 = vector.broadcast %15 : f32 to vector<8x128xf32>
    %17 = arith.mulf %16, %1 : vector<8x128xf32>
    %c3 = arith.constant 3 : index
    %18 = memref.load %arg1[%c3] : memref<9xf32, #tpu.memory_space<smem>>
    %19 = vector.broadcast %18 : f32 to vector<8x128xf32>
    %20 = arith.mulf %19, %3 : vector<8x128xf32>
    %21 = arith.addf %17, %20 : vector<8x128xf32>
    %c5 = arith.constant 5 : index
    %22 = memref.load %arg1[%c5] : memref<9xf32, #tpu.memory_space<smem>>
    %23 = vector.broadcast %22 : f32 to vector<8x128xf32>
    %24 = arith.addf %21, %23 : vector<8x128xf32>
    %25 = math.tanh %24 : vector<8x128xf32>
    %c6 = arith.constant 6 : index
    %26 = memref.load %arg1[%c6] : memref<9xf32, #tpu.memory_space<smem>>
    %27 = vector.broadcast %26 : f32 to vector<8x128xf32>
    %28 = arith.mulf %27, %14 : vector<8x128xf32>
    %c7 = arith.constant 7 : index
    %29 = memref.load %arg1[%c7] : memref<9xf32, #tpu.memory_space<smem>>
    %30 = vector.broadcast %29 : f32 to vector<8x128xf32>
    %31 = arith.mulf %30, %25 : vector<8x128xf32>
    %32 = arith.addf %28, %31 : vector<8x128xf32>
    %c8 = arith.constant 8 : index
    %33 = memref.load %arg1[%c8] : memref<9xf32, #tpu.memory_space<smem>>
    %34 = vector.broadcast %33 : f32 to vector<8x128xf32>
    %35 = arith.addf %32, %34 : vector<8x128xf32>
    %36 = math.tanh %35 : vector<8x128xf32>
    %cst = arith.constant 5.000000e-01 : f32
    %37 = vector.broadcast %cst : f32 to vector<8x128xf32>
    %38 = arith.mulf %37, %36 : vector<8x128xf32>
    %cst_6 = arith.constant 5.000000e-01 : f32
    %39 = vector.broadcast %cst_6 : f32 to vector<8x128xf32>
    %40 = arith.addf %38, %39 : vector<8x128xf32>
    %c0_7 = arith.constant 0 : index
    %c0_8 = arith.constant 0 : index
    %41 = vector.load %arg3[%c0_7, %c0_8] : memref<8x128xf32, #tpu.memory_space<vmem>>, vector<8x128xf32>
    tpu.vector_store %arg3[%c0_7, %c0_8], %40 {strides = array<i32>} : memref<8x128xf32, #tpu.memory_space<vmem>>, vector<8x128xf32>,
    return
  }
  func.func @transform_0(%arg0: i32) -> i32 {
    %c0_i32 = arith.constant 0 : i32
    %c0_i32_0 = arith.constant 0 : i32
    return %c0_i32 : i32
  }
  func.func @transform_1(%arg0: i32) -> (i32, i32, i32) {
    %c0_i32 = arith.constant 0 : i32
    %c0_i32_0 = arith.constant 0 : i32
    %c0_i32_1 = arith.constant 0 : i32
    return %c0_i32, %arg0, %c0_i32_0 : i32, i32, i32
  }
  func.func @transform_2(%arg0: i32) -> (i32, i32) {
    %c0_i32 = arith.constant 0 : i32
    %c0_i32_0 = arith.constant 0 : i32
    return %arg0, %c0_i32 : i32, i32
  }
}

</mosaic_0001>

<llo_original>
// kernel: question4_forward.1
$region0: #{question4_forward.1}
  #allocation0 [shape = 'u32[]', space=smem, size = 0x4, offset = 0x4, fixed_abs, tag = 'smem constant byte address 0x4 - core index']
  #allocation1 [shape = 'u32[144,128]{1,0:T(1,128)}', space=vmem, size = 0x12000, scoped, tag = 'internal scratch']
  %s0 = inlined_call_operand.vmem [shape: f32[9], index: 0, kind: input, shape index: {}]
  %s1 = inlined_call_operand.vmem [shape: f32[2,8,128], index: 1, kind: input, shape index: {}]
  %s2 = inlined_call_operand.vmem [shape: f32[8,128], index: 2, kind: output, shape index: {}]
  %s3 = sld [smem:[#allocation0]]
  $region22: #{question4_forward.1} parent=0
    _
  %s5 = ssub.s32 1, %s3
  %s6 = scalar_select 0, %s5, %s3
  $region1: #{question4_forward.1} parent=0
    #allocation2 [shape = 'u8[512]{0}', space=smem, size = 0x200, scoped, tag = 'input window, operand 0, single buffered']
    #allocation3 [shape = 's32[1]{0}', space=sflag, size = 0x4, scoped, tag = 'scoped memory for question4_forward.1']
    %7 = vsyncpa [#allocation3], 0
    // Predicated region
    $region2: #{question4_forward.1} parent=1 // pred_check
      _
    $region3: #{question4_forward.1} parent=1 // pred_check_branch
      %9 = sbr.rel (0) target = $region5
    $region4: #{question4_forward.1} parent=1 // pred_region
      %s11 = ssub.s32 16, 16
      %12 = vsyncadd [#allocation3], %s11
      %s14 = sshll.u32 %s0, 4
      %s15 = int_to_ptr.vmem [resolvable:$true] %s14
      %17 = dma.vmem_to_smem %s15, 16, [#allocation2], [#allocation3]
    $region5: #{question4_forward.1} parent=1 // pred_fallthru
      _
    // Predicated region
    $region6: #{question4_forward.1} parent=1 // pred_check
      _
    $region7: #{question4_forward.1} parent=1 // pred_check_branch
      %19 = sbr.rel (0) target = $region9
    $region8: #{question4_forward.1} parent=1 // pred_region
      _
    $region9: #{question4_forward.1} parent=1 // pred_fallthru
      _
    // Predicated region
    $region10: #{question4_forward.1} parent=1 // pred_check
      _
    $region11: #{question4_forward.1} parent=1 // pred_check_branch
      %21 = sbr.rel (0) target = $region13
    $region12: #{question4_forward.1} parent=1 // pred_region
      %22 = dma.done [#allocation3], 16
    $region13: #{question4_forward.1} parent=1 // pred_fallthru
      _
    %23 = sfence
    %v24 = vld [vmem:[%s1] sm:$0xff]
    %s25 = scalar_lea.vmem %s1, 8
    %v26 = vld [vmem:[%s25] sm:$0xff]
    %s27 = sld [smem:[#allocation2]]
    %v28 = vstv %s27
    %v29 = vmul.f32 %v28, %v24
    %s30 = sld [smem:[#allocation2 + $0x1]]
    %v31 = vstv %s30
    %v32 = vmul.f32 %v31, %v26
    %v33 = vadd.f32 %v29, %v32
    %s34 = sld [smem:[#allocation2 + $0x4]]
    %v35 = vstv %s34
    %v36 = vadd.f32 %v33, %v35
    %v37 = vtanh.pop %v36
    %s38 = sld [smem:[#allocation2 + $0x2]]
    %v39 = vstv %s38
    %v40 = vmul.f32 %v39, %v24
    %s41 = sld [smem:[#allocation2 + $0x3]]
    %v42 = vstv %s41
    %v43 = vmul.f32 %v42, %v26
    %v44 = vadd.f32 %v40, %v43
    %s45 = sld [smem:[#allocation2 + $0x5]]
    %v46 = vstv %s45
    %v47 = vadd.f32 %v44, %v46
    %v48 = vtanh.pop %v47
    %s49 = sld [smem:[#allocation2 + $0x6]]
    %v50 = vstv %s49
    %v51 = vmul.f32 %v50, %v37
    %s52 = sld [smem:[#allocation2 + $0x7]]
    %v53 = vstv %s52
    %v54 = vmul.f32 %v53, %v48
    %v55 = vadd.f32 %v51, %v54
    %s56 = sld [smem:[#allocation2 + $0x8]]
    %v57 = vstv %s56
    %v58 = vadd.f32 %v55, %v57
    %v59 = vtanh.pop %v58
    %v60 = vmul.f32 %v59, 0.5
    %v61 = vadd.f32 %v60, 0.5
    %62 = vst [vmem:[%s2] sm:$0xff] %v61
    // Predicated region
    $region14: #{question4_forward.1} parent=1 // pred_check
      _
    $region15: #{question4_forward.1} parent=1 // pred_check_branch
      %64 = sbr.rel (0) target = $region17
    $region16: #{question4_forward.1} parent=1 // pred_region
      _
    $region17: #{question4_forward.1} parent=1 // pred_fallthru
      _
    // Predicated region
    $region18: #{question4_forward.1} parent=1 // pred_check
      _
    $region19: #{question4_forward.1} parent=1 // pred_check_branch
      %66 = sbr.rel (0) target = $region21
    $region20: #{question4_forward.1} parent=1 // pred_region
      _
    $region21: #{question4_forward.1} parent=1 // pred_fallthru
      _
    %67 = vsyncpa [#allocation3], 1

</llo_original>
